<compile_context>
chip_gen: v7x
topology: tpu7x:2x2x1
jax: 0.10.0
libtpu: 0.0.40
codegen_flags: <defaults>
</compile_context>

<pallas_src>
import functools
from typing import NamedTuple

import jax
import jax.numpy as jnp
from jax import lax
from jax.experimental import pallas as pl
from jax.experimental.pallas import tpu as pltpu


def _round_up(x, m):
    return (x + m - 1) // m * m


def _vmem_capacity_bytes():
    try:
        info = pltpu.get_tpu_info()
        cap = getattr(info, "vmem_capacity_bytes", None)
        if cap:
            return int(cap)
    except Exception:
        pass
    return 64 * 1024 * 1024  # conservative fallback (v7x per-TC VMEM)


class PreparedSkipMLPWeights(NamedTuple):
    w_cat: jax.Array     # [nk, Hp, 2*tn]  (bf16/f32): tile k = [gate_k | up_k]
    w_down_t: jax.Array  # [nk, tn, Hp]
    hidden_size: int
    n_active: int
    tn: int


def prepare_skip_mlp_weights(w_gate, w_up, w_down, *, sparsity, tn=256,
                             compute_dtype=jnp.bfloat16):
    """One-time weight repack (cache the result; do NOT call per forward).

    w_gate/w_up: [I, H], w_down: [H, I]  (PyTorch nn.Linear convention)."""
    I, H = w_gate.shape
    n_active = int(I * sparsity)

    Hp = _round_up(H, 128)
    na_pad = _round_up(max(n_active, 1), 128)
    tn = min(tn, na_pad)
    na_pad = _round_up(na_pad, tn)
    nk = na_pad // tn

    wg_t = jnp.zeros((Hp, na_pad), compute_dtype).at[:H, :n_active].set(
        w_gate[:n_active, :].T.astype(compute_dtype))
    wu_t = jnp.zeros((Hp, na_pad), compute_dtype).at[:H, :n_active].set(
        w_up[:n_active, :].T.astype(compute_dtype))
    # Interleave per Na-tile: tile k's 2*tn lane columns = [gate_k | up_k].
    w_cat = jnp.concatenate(
        [wg_t.reshape(Hp, nk, 1, tn), wu_t.reshape(Hp, nk, 1, tn)], axis=2)
    w_cat = w_cat.reshape(Hp, nk, 2 * tn).transpose(1, 0, 2)     # [nk, Hp, 2*tn]

    w_down_t = jnp.zeros((na_pad, Hp), compute_dtype).at[:n_active, :H].set(
        w_down[:, :n_active].T.astype(compute_dtype))
    w_down_t = w_down_t.reshape(nk, tn, Hp)                       # [nk, tn, Hp]

    return PreparedSkipMLPWeights(w_cat=w_cat, w_down_t=w_down_t,
                                  hidden_size=H, n_active=n_active, tn=tn)


# ----------------------------- kernels -------------------------------------

def _skip_mlp_resident_kernel(x_ref, wcat_ref, wdt_ref, o_ref, *, nk, tn):
    """Weights fully resident in VMEM; in-kernel loop over Na tiles."""
    x = x_ref[...]

    def tile_partial(l):
        c = jnp.dot(x, wcat_ref[l], preferred_element_type=jnp.float32)  # [tm, 2tn]
        g = c[:, :tn]                  # lane-aligned views (tn % 128 == 0)
        u = c[:, tn:]
        h = (g * jax.nn.sigmoid(g)) * u                                   # f32
        return jnp.dot(h.astype(wdt_ref.dtype), wdt_ref[l],
                       preferred_element_type=jnp.float32)                # [tm, Hp]

    acc = tile_partial(0)              # no zero-init pass
    if nk > 1:
        acc = lax.fori_loop(1, nk, lambda l, a: a + tile_partial(l), acc,
                            unroll=(nk <= 8))
    o_ref[...] = acc.astype(o_ref.dtype)


def _skip_mlp_stream_kernel(x_ref, wcat_ref, wdt_ref, o_ref, acc_ref, *, tn):
    """Na is a grid reduction axis; weights streamed per (token, Na) tile."""
    k = pl.program_id(1)
    x = x_ref[...]

    c = jnp.dot(x, wcat_ref[0], preferred_element_type=jnp.float32)       # [tm, 2tn]
    g = c[:, :tn]
    u = c[:, tn:]
    h = (g * jax.nn.sigmoid(g)) * u                                        # f32
    partial = jnp.dot(h.astype(wdt_ref.dtype), wdt_ref[0],
                      preferred_element_type=jnp.float32)                  # [tm, Hp]

    @pl.when(k == 0)
    def _():
        acc_ref[...] = partial          # direct store; no zero-init + add

    @pl.when(k > 0)
    def _():
        acc_ref[...] += partial

    @pl.when(k == pl.num_programs(1) - 1)
    def _():
        o_ref[...] = acc_ref[...].astype(o_ref.dtype)


# ----------------------------- wrapper --------------------------------------

def skip_mlp_forward(x, prepared: PreparedSkipMLPWeights, *, tm=512,
                     out_dtype=None, mode="auto", vmem_limit_bytes=None):
    """x: [..., H].  `prepared` from prepare_skip_mlp_weights (cached)."""
    w_cat, w_down_t = prepared.w_cat, prepared.w_down_t
    nk, Hp, two_tn = w_cat.shape
    tn = prepared.tn
    H = prepared.hidden_size
    cdt = w_cat.dtype
    if out_dtype is None:
        out_dtype = x.dtype

    orig_shape = x.shape
    x2 = x.reshape(-1, H)
    T = x2.shape[0]
    # Token tile: >=128 MXU rows; small T snaps to 128-multiples (few buckets).
    tm = max(128, min(tm, _round_up(T, 128)))
    Tp = _round_up(T, tm)

    if Tp == T and Hp == H:
        x_p = x2.astype(cdt)                      # no pad copy needed
    else:
        x_p = jnp.zeros((Tp, Hp), cdt).at[:T, :H].set(x2.astype(cdt))

    # Per-generation VMEM budget (v5e/v6e: 128 MiB, v7x: 64 MiB per TC).
    if vmem_limit_bytes is None:
        cap = _vmem_capacity_bytes()
        vmem_limit_bytes = min(int(cap * 0.85), 112 * 1024 * 1024)

    itemsize = jnp.dtype(cdt).itemsize
    out_itemsize = jnp.dtype(out_dtype).itemsize
    weight_bytes = 3 * nk * tn * Hp * itemsize
    act_bytes = (2 * tm * Hp * itemsize            # x double-buffer
                 + 2 * tm * Hp * out_itemsize      # out double-buffer
                 + tm * Hp * 4                     # f32 accumulator
                 + 4 * tm * 2 * tn * 4)            # f32 c/h temporaries (margin)
    if mode == "auto":
        resident = (2 * weight_bytes + act_bytes) <= int(vmem_limit_bytes * 0.9)
    elif mode == "resident":
        resident = True
    elif mode == "stream":
        resident = False
    else:
        raise ValueError(f"unknown mode: {mode}")

    if resident:
        kernel = functools.partial(_skip_mlp_resident_kernel, nk=nk, tn=tn)
        out = pl.pallas_call(
            kernel,
            out_shape=jax.ShapeDtypeStruct((Tp, Hp), out_dtype),
            grid_spec=pltpu.PrefetchScalarGridSpec(
                num_scalar_prefetch=0,
                grid=(Tp // tm,),
                in_specs=[
                    pl.BlockSpec((tm, Hp), lambda i: (i, 0)),
                    pl.BlockSpec((nk, Hp, 2 * tn), lambda i: (0, 0, 0)),
                    pl.BlockSpec((nk, tn, Hp), lambda i: (0, 0, 0)),
                ],
                out_specs=pl.BlockSpec((tm, Hp), lambda i: (i, 0)),
            ),
            compiler_params=pltpu.CompilerParams(
                dimension_semantics=("parallel",),
                vmem_limit_bytes=vmem_limit_bytes,
            ),
        )(x_p, w_cat, w_down_t)
    else:
        kernel = functools.partial(_skip_mlp_stream_kernel, tn=tn)
        out = pl.pallas_call(
            kernel,
            out_shape=jax.ShapeDtypeStruct((Tp, Hp), out_dtype),
            grid_spec=pltpu.PrefetchScalarGridSpec(
                num_scalar_prefetch=0,
                grid=(Tp // tm, nk),
                in_specs=[
                    pl.BlockSpec((tm, Hp), lambda i, k: (i, 0)),
                    pl.BlockSpec((1, Hp, 2 * tn), lambda i, k: (k, 0, 0)),
                    pl.BlockSpec((1, tn, Hp), lambda i, k: (k, 0, 0)),
                ],
                out_specs=pl.BlockSpec((tm, Hp), lambda i, k: (i, 0)),
                scratch_shapes=[pltpu.VMEM((tm, Hp), jnp.float32)],
            ),
            compiler_params=pltpu.CompilerParams(
                dimension_semantics=("parallel", "arbitrary"),
                vmem_limit_bytes=vmem_limit_bytes,
            ),
        )(x_p, w_cat, w_down_t)

    return out[:T, :H].reshape(orig_shape)


# ----------------------------- reference & test -----------------------------

def _reference(x, w_gate, w_up, w_down, sparsity):
    H = x.shape[-1]
    I = w_gate.shape[0]
    na = int(I * sparsity)
    x2 = x.reshape(-1, H)
    g = x2 @ w_gate[:na].T
    u = x2 @ w_up[:na].T
    h = (g * jax.nn.sigmoid(g)) * u
    return (h @ w_down[:, :na].T).reshape(x.shape)


if __name__ == "__main__":
    # Small shapes consistent with the module: hidden=32, intermediate=64,
    # sparsity=0.5 -> 32 active units; batch=2, seq=8 -> 16 tokens.
    hidden_size = 32
    intermediate_size = 64
    sparsity = 0.5
    batch, seq = 2, 8

    key = jax.random.PRNGKey(0)
    kx, kg, ku, kd = jax.random.split(key, 4)

    bound_h = 1.0 / (hidden_size ** 0.5)
    bound_i = 1.0 / (intermediate_size ** 0.5)
    w_gate = jax.random.uniform(kg, (intermediate_size, hidden_size),
                                jnp.float32, -bound_h, bound_h)
    w_up = jax.random.uniform(ku, (intermediate_size, hidden_size),
                              jnp.float32, -bound_h, bound_h)
    w_down = jax.random.uniform(kd, (hidden_size, intermediate_size),
                                jnp.float32, -bound_i, bound_i)

    x = jax.random.normal(kx, (batch, seq, hidden_size), jnp.float32)

    ref = _reference(x, w_gate, w_up, w_down, sparsity)

    # One-time weight prep (in real serving this is cached by the caller).
    prep_f32 = prepare_skip_mlp_weights(w_gate, w_up, w_down, sparsity=sparsity,
                                        compute_dtype=jnp.float32)
    prep_bf16 = prepare_skip_mlp_weights(w_gate, w_up, w_down, sparsity=sparsity,
                                         compute_dtype=jnp.bfloat16)

    # Exact-semantics check in f32 compute: resident (auto) path.
    out_f32 = jax.block_until_ready(skip_mlp_forward(x, prep_f32))
    assert out_f32.shape == (batch, seq, hidden_size)
    assert jnp.allclose(out_f32, ref, atol=1e-5, rtol=1e-5)

    # Also exercise the streaming (grid-reduction) path.
    out_stream = jax.block_until_ready(skip_mlp_forward(x, prep_f32, mode="stream"))
    assert out_stream.shape == (batch, seq, hidden_size)
    assert jnp.allclose(out_stream, ref, atol=1e-5, rtol=1e-5)

    # Fast path: bf16 MXU compute with f32 accumulation (loose tolerance; two
    # bf16 rounding steps relative to the f32 reference).
    out_bf16 = jax.block_until_ready(skip_mlp_forward(x, prep_bf16))
    assert out_bf16.shape == (batch, seq, hidden_size)
    assert jnp.allclose(out_bf16, ref, atol=3e-2, rtol=3e-2)

    print("KERNEL_OK")
</pallas_src>

<mosaic_0001>
module attributes {stable_mosaic.version = 11 : i64} {
  func.func @_skip_mlp_resident_kernel(%arg0: i32, %arg1: memref<128x128xf32, #tpu.memory_space<vmem>>, %arg2: memref<1x128x256xf32, #tpu.memory_space<vmem>>, %arg3: memref<1x128x128xf32, #tpu.memory_space<vmem>>, %arg4: memref<128x128xf32, #tpu.memory_space<vmem>>) attributes {dimension_semantics = [#tpu.dimension_semantics<parallel>], iteration_bounds = array<i64: 1>, scalar_prefetch = 0 : i64, scratch_operands = 0 : i64, tpu.core_type = #tpu.core_type<tc>, window_params = [{transform_indices = @transform_0, window_bounds = array<i64: 128, 128>}, {pipeline_mode = #tpu.pipeline_mode<synchronous>, transform_indices = @transform_1, window_bounds = array<i64: 1, 128, 256>}, {pipeline_mode = #tpu.pipeline_mode<synchronous>, transform_indices = @transform_2, window_bounds = array<i64: 1, 128, 128>}, {transform_indices = @transform_3, window_bounds = array<i64: 128, 128>}]} {
    %c0 = arith.constant 0 : index
    %c0_0 = arith.constant 0 : index
    %0 = vector.load %arg1[%c0, %c0_0] : memref<128x128xf32, #tpu.memory_space<vmem>>, vector<128x128xf32>
    %c0_1 = arith.constant 0 : index
    %c0_2 = arith.constant 0 : index
    %c0_3 = arith.constant 0 : index
    %1 = vector.load %arg2[%c0_1, %c0_2, %c0_3] : memref<1x128x256xf32, #tpu.memory_space<vmem>>, vector<1x128x256xf32>
    %2 = vector.shape_cast %1 : vector<1x128x256xf32> to vector<128x256xf32>
    %cst = arith.constant dense<0.000000e+00> : vector<128x256xf32>
    %3 = tpu.matmul %0, %2, %cst {dimension_numbers = #tpu.dot_dimension_numbers<[1], [0], [0], [1], [0, 0, 1, 1], [], []>} : vector<128x128xf32>, vector<128x256xf32>, vector<128x256xf32> -> vector<128x256xf32>
    %4 = vector.extract_strided_slice %3 {offsets = [0, 0], sizes = [128, 128], strides = [1, 1]} : vector<128x256xf32> to vector<128x128xf32>
    %5 = vector.extract_strided_slice %3 {offsets = [0, 128], sizes = [128, 128], strides = [1, 1]} : vector<128x256xf32> to vector<128x128xf32>
    %6 = arith.negf %4 : vector<128x128xf32>
    %7 = math.exp %6 : vector<128x128xf32>
    %cst_4 = arith.constant 1.000000e+00 : f32
    %8 = vector.broadcast %cst_4 : f32 to vector<128x128xf32>
    %9 = arith.addf %8, %7 : vector<128x128xf32>
    %10 = arith.divf %8, %9 : vector<128x128xf32>
    %11 = arith.mulf %4, %10 : vector<128x128xf32>
    %12 = arith.mulf %11, %5 : vector<128x128xf32>
    %c0_5 = arith.constant 0 : index
    %c0_6 = arith.constant 0 : index
    %c0_7 = arith.constant 0 : index
    %13 = vector.load %arg3[%c0_5, %c0_6, %c0_7] : memref<1x128x128xf32, #tpu.memory_space<vmem>>, vector<1x128x128xf32>
    %14 = vector.shape_cast %13 : vector<1x128x128xf32> to vector<128x128xf32>
    %cst_8 = arith.constant dense<0.000000e+00> : vector<128x128xf32>
    %15 = tpu.matmul %12, %14, %cst_8 {dimension_numbers = #tpu.dot_dimension_numbers<[1], [0], [0], [1], [0, 0, 1, 1], [], []>} : vector<128x128xf32>, vector<128x128xf32>, vector<128x128xf32> -> vector<128x128xf32>
    %c0_9 = arith.constant 0 : index
    %c0_10 = arith.constant 0 : index
    %16 = vector.load %arg4[%c0_9, %c0_10] : memref<128x128xf32, #tpu.memory_space<vmem>>, vector<128x128xf32>
    tpu.vector_store %arg4[%c0_9, %c0_10], %15 {strides = array<i32>} : memref<128x128xf32, #tpu.memory_space<vmem>>, vector<128x128xf32>,
    return
  }
  func.func @transform_0(%arg0: i32) -> (i32, i32) {
    %c0_i32 = arith.constant 0 : i32
    %c0_i32_0 = arith.constant 0 : i32
    return %arg0, %c0_i32 : i32, i32
  }
  func.func @transform_1(%arg0: i32) -> (i32, i32, i32) {
    %c0_i32 = arith.constant 0 : i32
    %c0_i32_0 = arith.constant 0 : i32
    %c0_i32_1 = arith.constant 0 : i32
    %c0_i32_2 = arith.constant 0 : i32
    return %c0_i32, %c0_i32_0, %c0_i32_1 : i32, i32, i32
  }
  func.func @transform_2(%arg0: i32) -> (i32, i32, i32) {
    %c0_i32 = arith.constant 0 : i32
    %c0_i32_0 = arith.constant 0 : i32
    %c0_i32_1 = arith.constant 0 : i32
    %c0_i32_2 = arith.constant 0 : i32
    return %c0_i32, %c0_i32_0, %c0_i32_1 : i32, i32, i32
  }
  func.func @transform_3(%arg0: i32) -> (i32, i32) {
    %c0_i32 = arith.constant 0 : i32
    %c0_i32_0 = arith.constant 0 : i32
    return %arg0, %c0_i32 : i32, i32
  }
}

</mosaic_0001>

<llo_original>
// kernel: tpu_custom_call.1
$region0: #{tpu_custom_call.1}
  #allocation0 [shape = 'u32[]', space=smem, size = 0x4, offset = 0x4, fixed_abs, tag = 'smem constant byte address 0x4 - core index']
  #allocation1 [shape = 'u32[144,128]{1,0:T(1,128)}', space=vmem, size = 0x12000, scoped, tag = 'internal scratch']
  %s0 = inlined_call_operand.hbm [shape: f32[128,128], index: 0, kind: input, shape index: {}]
  %s1 = inlined_call_operand.hbm [shape: f32[1,128,256], index: 1, kind: input, shape index: {}]
  %s2 = inlined_call_operand.hbm [shape: f32[1,128,128], index: 2, kind: input, shape index: {}]
  %s3 = inlined_call_operand.hbm [shape: f32[128,128], index: 3, kind: output, shape index: {}]
  %s4 = sld [smem:[#allocation0]]
  $region34: #{tpu_custom_call.1} parent=0
    _
  %s6 = ssub.s32 1, %s4
  %s7 = scalar_select 0, %s6, %s4
  $region1: #{tpu_custom_call.1} parent=0
    #allocation2 [shape = 'u8[65536]{0}', space=vmem, size = 0x10000, scoped, tag = 'input window, operand 0, single buffered']
    #allocation3 [shape = 's32[1]{0}', space=sflag, size = 0x4, scoped, tag = 'scoped memory for tpu_custom_call.1']
    #allocation4 [shape = 's32[1]{0}', space=sflag, size = 0x4, scoped, tag = 'scoped memory for tpu_custom_call.1']
    #allocation5 [shape = 'u8[131072]{0}', space=vmem, size = 0x20000, scoped, tag = 'input window, operand 1, single buffered']
    #allocation6 [shape = 's32[1]{0}', space=sflag, size = 0x4, scoped, tag = 'scoped memory for tpu_custom_call.1']
    #allocation7 [shape = 'u8[65536]{0}', space=vmem, size = 0x10000, scoped, tag = 'input window, operand 2, single buffered']
    #allocation8 [shape = 'u8[65536]{0}', space=vmem, size = 0x10000, scoped, tag = 'output window, operand 0, single buffered']
    %8 = vsyncpa [#allocation3], 0
    %9 = vsyncpa [#allocation6], 0
    %10 = vsyncpa [#allocation4], 0
    // Predicated region
    $region2: #{tpu_custom_call.1} parent=1 // pred_check
      _
    $region3: #{tpu_custom_call.1} parent=1 // pred_check_branch
      %12 = sbr.rel (0) target = $region5
    $region4: #{tpu_custom_call.1} parent=1 // pred_region
      %s14 = ssub.s32 2048, 2048
      %15 = vsyncadd [#allocation3], %s14
      %s16 = sshll.u32 [#allocation2], 4
      %s17 = int_to_ptr.vmem [resolvable:$true] %s16
      %22 = dma.hbm_to_vmem [thread:$0]  %s0, 2048, %s17, [#allocation3], 128, 128, 8
    $region5: #{tpu_custom_call.1} parent=1 // pred_fallthru
      _
    // Predicated region
    $region6: #{tpu_custom_call.1} parent=1 // pred_check
      _
    $region7: #{tpu_custom_call.1} parent=1 // pred_check_branch
      %24 = sbr.rel (0) target = $region9
    $region8: #{tpu_custom_call.1} parent=1 // pred_region
      %s26 = ssub.s32 4096, 4096
      %27 = vsyncadd [#allocation6], %s26
      %s28 = sshll.u32 [#allocation5], 4
      %s29 = int_to_ptr.vmem [resolvable:$true] %s28
      %34 = dma.hbm_to_vmem [thread:$0]  %s1, 4096, %s29, [#allocation6], 256, 256, 16
    $region9: #{tpu_custom_call.1} parent=1 // pred_fallthru
      _
    // Predicated region
    $region10: #{tpu_custom_call.1} parent=1 // pred_check
      _
    $region11: #{tpu_custom_call.1} parent=1 // pred_check_branch
      %36 = sbr.rel (0) target = $region13
    $region12: #{tpu_custom_call.1} parent=1 // pred_region
      %s38 = ssub.s32 2048, 2048
      %39 = vsyncadd [#allocation6], %s38
      %s40 = sshll.u32 [#allocation7], 4
      %s41 = int_to_ptr.vmem [resolvable:$true] %s40
      %46 = dma.hbm_to_vmem [thread:$0]  %s2, 2048, %s41, [#allocation6], 128, 128, 8
    $region13: #{tpu_custom_call.1} parent=1 // pred_fallthru
      _
    // Predicated region
    $region14: #{tpu_custom_call.1} parent=1 // pred_check
      _
    $region15: #{tpu_custom_call.1} parent=1 // pred_check_branch
      %48 = sbr.rel (0) target = $region17
    $region16: #{tpu_custom_call.1} parent=1 // pred_region
      %49 = dma.done [#allocation3], 2048
    $region17: #{tpu_custom_call.1} parent=1 // pred_fallthru
      _
    // Predicated region
    $region18: #{tpu_custom_call.1} parent=1 // pred_check
      _
    $region19: #{tpu_custom_call.1} parent=1 // pred_check_branch
      %51 = sbr.rel (0) target = $region21
    $region20: #{tpu_custom_call.1} parent=1 // pred_region
      %52 = dma.done [#allocation6], 4096
    $region21: #{tpu_custom_call.1} parent=1 // pred_fallthru
      _
    // Predicated region
    $region22: #{tpu_custom_call.1} parent=1 // pred_check
      _
    $region23: #{tpu_custom_call.1} parent=1 // pred_check_branch
      %54 = sbr.rel (0) target = $region25
    $region24: #{tpu_custom_call.1} parent=1 // pred_region
      %55 = dma.done [#allocation6], 2048
    $region25: #{tpu_custom_call.1} parent=1 // pred_fallthru
      _
    %v56 = vld [vmem:[#allocation2] sm:$0xff]
    %v57 = vld [vmem:[#allocation2 + $0x8] sm:$0xff]
    %v58 = vld [vmem:[#allocation2 + $0x10] sm:$0xff]
    %v59 = vld [vmem:[#allocation2 + $0x18] sm:$0xff]
    %v60 = vld [vmem:[#allocation2 + $0x20] sm:$0xff]
    %v61 = vld [vmem:[#allocation2 + $0x28] sm:$0xff]
    %v62 = vld [vmem:[#allocation2 + $0x30] sm:$0xff]
    %v63 = vld [vmem:[#allocation2 + $0x38] sm:$0xff]
    %v64 = vld [vmem:[#allocation2 + $0x40] sm:$0xff]
    %v65 = vld [vmem:[#allocation2 + $0x48] sm:$0xff]
    %v66 = vld [vmem:[#allocation2 + $0x50] sm:$0xff]
    %v67 = vld [vmem:[#allocation2 + $0x58] sm:$0xff]
    %v68 = vld [vmem:[#allocation2 + $0x60] sm:$0xff]
    %v69 = vld [vmem:[#allocation2 + $0x68] sm:$0xff]
    %v70 = vld [vmem:[#allocation2 + $0x70] sm:$0xff]
    %v71 = vld [vmem:[#allocation2 + $0x78] sm:$0xff]
    %v72 = vld [vmem:[#allocation5] sm:$0xff]
    %v73 = vld [vmem:[#allocation5 + $0x8] sm:$0xff]
    %v74 = vld [vmem:[#allocation5 + $0x10] sm:$0xff]
    %v75 = vld [vmem:[#allocation5 + $0x18] sm:$0xff]
    %v76 = vld [vmem:[#allocation5 + $0x20] sm:$0xff]
    %v77 = vld [vmem:[#allocation5 + $0x28] sm:$0xff]
    %v78 = vld [vmem:[#allocation5 + $0x30] sm:$0xff]
    %v79 = vld [vmem:[#allocation5 + $0x38] sm:$0xff]
    %v80 = vld [vmem:[#allocation5 + $0x40] sm:$0xff]
    %v81 = vld [vmem:[#allocation5 + $0x48] sm:$0xff]
    %v82 = vld [vmem:[#allocation5 + $0x50] sm:$0xff]
    %v83 = vld [vmem:[#allocation5 + $0x58] sm:$0xff]
    %v84 = vld [vmem:[#allocation5 + $0x60] sm:$0xff]
    %v85 = vld [vmem:[#allocation5 + $0x68] sm:$0xff]
    %v86 = vld [vmem:[#allocation5 + $0x70] sm:$0xff]
    %v87 = vld [vmem:[#allocation5 + $0x78] sm:$0xff]
    %v88 = vld [vmem:[#allocation5 + $0x80] sm:$0xff]
    %v89 = vld [vmem:[#allocation5 + $0x88] sm:$0xff]
    %v90 = vld [vmem:[#allocation5 + $0x90] sm:$0xff]
    %v91 = vld [vmem:[#allocation5 + $0x98] sm:$0xff]
    %v92 = vld [vmem:[#allocation5 + $0xa0] sm:$0xff]
    %v93 = vld [vmem:[#allocation5 + $0xa8] sm:$0xff]
    %v94 = vld [vmem:[#allocation5 + $0xb0] sm:$0xff]
    %v95 = vld [vmem:[#allocation5 + $0xb8] sm:$0xff]
    %v96 = vld [vmem:[#allocation5 + $0xc0] sm:$0xff]
    %v97 = vld [vmem:[#allocation5 + $0xc8] sm:$0xff]
    %v98 = vld [vmem:[#allocation5 + $0xd0] sm:$0xff]
    %v99 = vld [vmem:[#allocation5 + $0xd8] sm:$0xff]
    %v100 = vld [vmem:[#allocation5 + $0xe0] sm:$0xff]
    %v101 = vld [vmem:[#allocation5 + $0xe8] sm:$0xff]
    %v102 = vld [vmem:[#allocation5 + $0xf0] sm:$0xff]
    %v103 = vld [vmem:[#allocation5 + $0xf8] sm:$0xff]
    %104 = vmatprep.subr.mxu0 %v73
    %105 = vmatpush1.msra.mxu0 %v72
    %106 = vmatprep.subr.mxu0 %v75
    %107 = vmatpush1.msra.mxu0 %v74
    %108 = vmatprep.subr.mxu0 %v77
    %109 = vmatpush1.msra.mxu0 %v76
    %110 = vmatprep.subr.mxu0 %v79
    %111 = vmatpush1.msra.mxu0 %v78
    %112 = vmatprep.subr.mxu0 %v81
    %113 = vmatpush1.msra.mxu0 %v80
    %114 = vmatprep.subr.mxu0 %v83
    %115 = vmatpush1.msra.mxu0 %v82
    %116 = vmatprep.subr.mxu0 %v85
    %117 = vmatpush1.msra.mxu0 %v84
    %118 = vmatprep.subr.mxu0 %v87
    %119 = vmatpush1.msra.mxu0 %v86
    %120 = vmatprep.subr.mxu0 %v89
    %121 = vmatpush1.msra.mxu0 %v88
    %122 = vmatprep.subr.mxu0 %v91
    %123 = vmatpush1.msra.mxu0 %v90
    %124 = vmatprep.subr.mxu0 %v93
    %125 = vmatpush1.msra.mxu0 %v92
    %126 = vmatprep.subr.mxu0 %v95
    %127 = vmatpush1.msra.mxu0 %v94
    %128 = vmatprep.subr.mxu0 %v97
    %129 = vmatpush1.msra.mxu0 %v96
    %130 = vmatprep.subr.mxu0 %v99
    %131 = vmatpush1.msra.mxu0 %v98
    %132 = vmatprep.subr.mxu0 %v101
    %133 = vmatpush1.msra.mxu0 %v100
    %134 = vmatprep.subr.mxu0 %v103
    %135 = vmatpush1.msra.mxu0 %v102
    %136 = vmatprep.subr.mxu0 0.0
    %137 = vmatpush1.msra.mxu0 0.0
    %138 = vmatprep.subr.mxu0 0.0
    %139 = vmatpush1.msra.mxu0 0.0
    %140 = vmatprep.subr.mxu0 0.0
    %141 = vmatpush1.msra.mxu0 0.0
    %142 = vmatprep.subr.mxu0 0.0
    %143 = vmatpush1.msra.mxu0 0.0
    %144 = vmatprep.subr.mxu0 0.0
    %145 = vmatpush1.msra.mxu0 0.0
    %146 = vmatprep.subr.mxu0 0.0
    %147 = vmatpush1.msra.mxu0 0.0
    %148 = vmatprep.subr.mxu0 0.0
    %149 = vmatpush1.msra.mxu0 0.0
    %150 = vmatprep.subr.mxu0 0.0
    %151 = vmatpush1.msra.mxu0 0.0
    %152 = vmatprep.subr.mxu0 0.0
    %153 = vmatpush1.msra.mxu0 0.0
    %154 = vmatprep.subr.mxu0 0.0
    %155 = vmatpush1.msra.mxu0 0.0
    %156 = vmatprep.subr.mxu0 0.0
    %157 = vmatpush1.msra.mxu0 0.0
    %158 = vmatprep.subr.mxu0 0.0
    %159 = vmatpush1.msra.mxu0 0.0
    %160 = vmatprep.subr.mxu0 0.0
    %161 = vmatpush1.msra.mxu0 0.0
    %162 = vmatprep.subr.mxu0 0.0
    %163 = vmatpush1.msra.mxu0 0.0
    %164 = vmatprep.subr.mxu0 0.0
    %165 = vmatpush1.msra.mxu0 0.0
    %166 = vmatprep.subr.mxu0 0.0
    %167 = vmatpush1.msra.mxu0 0.0
    %168 = vmatprep.mubr.f32.mxu0 0.0
    %169 = vmatmul.mubr.f32.gmra.mrb[0].mxu0 %v56
    %v170 = vpop.f32.mrb[0].mxu0
    %v171 = vadd.f32 0.0, %v170
    %v172 = vpop.f32.mrb[0].mxu0
    %v173 = vadd.f32 0.0, %v172
    %174 = vmatprep.mubr.f32.mxu0 0.0
    %175 = vmatmul.mubr.f32.gmra.mrb[0].mxu0 %v57
    %v176 = vpop.f32.mrb[0].mxu0
    %v177 = vadd.f32 0.0, %v176
    %v178 = vpop.f32.mrb[0].mxu0
    %v179 = vadd.f32 0.0, %v178
    %180 = vmatprep.mubr.f32.mxu0 0.0
    %181 = vmatmul.mubr.f32.gmra.mrb[0].mxu0 %v58
    %v182 = vpop.f32.mrb[0].mxu0
    %v183 = vadd.f32 0.0, %v182
    %v184 = vpop.f32.mrb[0].mxu0
    %v185 = vadd.f32 0.0, %v184
    %186 = vmatprep.mubr.f32.mxu0 0.0
    %187 = vmatmul.mubr.f32.gmra.mrb[0].mxu0 %v59
    %v188 = vpop.f32.mrb[0].mxu0
    %v189 = vadd.f32 0.0, %v188
    %v190 = vpop.f32.mrb[0].mxu0
    %v191 = vadd.f32 0.0, %v190
    %192 = vmatprep.mubr.f32.mxu0 0.0
    %193 = vmatmul.mubr.f32.gmra.mrb[0].mxu0 %v60
    %v194 = vpop.f32.mrb[0].mxu0
    %v195 = vadd.f32 0.0, %v194
    %v196 = vpop.f32.mrb[0].mxu0
    %v197 = vadd.f32 0.0, %v196
    %198 = vmatprep.mubr.f32.mxu0 0.0
    %199 = vmatmul.mubr.f32.gmra.mrb[0].mxu0 %v61
    %v200 = vpop.f32.mrb[0].mxu0
    %v201 = vadd.f32 0.0, %v200
    %v202 = vpop.f32.mrb[0].mxu0
    %v203 = vadd.f32 0.0, %v202
    %204 = vmatprep.mubr.f32.mxu0 0.0
    %205 = vmatmul.mubr.f32.gmra.mrb[0].mxu0 %v62
    %v206 = vpop.f32.mrb[0].mxu0
    %v207 = vadd.f32 0.0, %v206
    %v208 = vpop.f32.mrb[0].mxu0
    %v209 = vadd.f32 0.0, %v208
    %210 = vmatprep.mubr.f32.mxu0 0.0
    %211 = vmatmul.mubr.f32.gmra.mrb[0].mxu0 %v63
    %v212 = vpop.f32.mrb[0].mxu0
    %v213 = vadd.f32 0.0, %v212
    %v214 = vpop.f32.mrb[0].mxu0
    %v215 = vadd.f32 0.0, %v214
    %216 = vmatprep.mubr.f32.mxu0 0.0
    %217 = vmatmul.mubr.f32.gmra.mrb[0].mxu0 %v64
    %v218 = vpop.f32.mrb[0].mxu0
    %v219 = vadd.f32 0.0, %v218
    %v220 = vpop.f32.mrb[0].mxu0
    %v221 = vadd.f32 0.0, %v220
    %222 = vmatprep.mubr.f32.mxu0 0.0
    %223 = vmatmul.mubr.f32.gmra.mrb[0].mxu0 %v65
    %v224 = vpop.f32.mrb[0].mxu0
    %v225 = vadd.f32 0.0, %v224
    %v226 = vpop.f32.mrb[0].mxu0
    %v227 = vadd.f32 0.0, %v226
    %228 = vmatprep.mubr.f32.mxu0 0.0
    %229 = vmatmul.mubr.f32.gmra.mrb[0].mxu0 %v66
    %v230 = vpop.f32.mrb[0].mxu0
    %v231 = vadd.f32 0.0, %v230
    %v232 = vpop.f32.mrb[0].mxu0
    %v233 = vadd.f32 0.0, %v232
    %234 = vmatprep.mubr.f32.mxu0 0.0
    %235 = vmatmul.mubr.f32.gmra.mrb[0].mxu0 %v67
    %v236 = vpop.f32.mrb[0].mxu0
    %v237 = vadd.f32 0.0, %v236
    %v238 = vpop.f32.mrb[0].mxu0
    %v239 = vadd.f32 0.0, %v238
    %240 = vmatprep.mubr.f32.mxu0 0.0
    %241 = vmatmul.mubr.f32.gmra.mrb[0].mxu0 %v68
    %v242 = vpop.f32.mrb[0].mxu0
    %v243 = vadd.f32 0.0, %v242
    %v244 = vpop.f32.mrb[0].mxu0
    %v245 = vadd.f32 0.0, %v244
    %246 = vmatprep.mubr.f32.mxu0 0.0
    %247 = vmatmul.mubr.f32.gmra.mrb[0].mxu0 %v69
    %v248 = vpop.f32.mrb[0].mxu0
    %v249 = vadd.f32 0.0, %v248
    %v250 = vpop.f32.mrb[0].mxu0
    %v251 = vadd.f32 0.0, %v250
    %252 = vmatprep.mubr.f32.mxu0 0.0
    %253 = vmatmul.mubr.f32.gmra.mrb[0].mxu0 %v70
    %v254 = vpop.f32.mrb[0].mxu0
    %v255 = vadd.f32 0.0, %v254
    %v256 = vpop.f32.mrb[0].mxu0
    %v257 = vadd.f32 0.0, %v256
    %258 = vmatprep.mubr.f32.mxu0 0.0
    %259 = vmatmul.mubr.f32.gmra.mrb[0].mxu0 %v71
    %v260 = vpop.f32.mrb[0].mxu0
    %v261 = vadd.f32 0.0, %v260
    %v262 = vpop.f32.mrb[0].mxu0
    %v263 = vadd.f32 0.0, %v262
    %264 = vdwg.mxu0
    %v265 = vxor.u32 %v171, 2147483648
    %v266 = vxor.u32 %v177, 2147483648
    %v267 = vxor.u32 %v183, 2147483648
    %v268 = vxor.u32 %v189, 2147483648
    %v269 = vxor.u32 %v195, 2147483648
    %v270 = vxor.u32 %v201, 2147483648
    %v271 = vxor.u32 %v207, 2147483648
    %v272 = vxor.u32 %v213, 2147483648
    %v273 = vxor.u32 %v219, 2147483648
    %v274 = vxor.u32 %v225, 2147483648
    %v275 = vxor.u32 %v231, 2147483648
    %v276 = vxor.u32 %v237, 2147483648
    %v277 = vxor.u32 %v243, 2147483648
    %v278 = vxor.u32 %v249, 2147483648
    %v279 = vxor.u32 %v255, 2147483648
    %v280 = vxor.u32 %v261, 2147483648
    %v281 = vmul.f32 %v265, 1.442695
    %v282 = vpow.pop %v281
    %v283 = vmul.f32 %v266, 1.442695
    %v284 = vpow.pop %v283
    %v285 = vmul.f32 %v267, 1.442695
    %v286 = vpow.pop %v285
    %v287 = vmul.f32 %v268, 1.442695
    %v288 = vpow.pop %v287
    %v289 = vmul.f32 %v269, 1.442695
    %v290 = vpow.pop %v289
    %v291 = vmul.f32 %v270, 1.442695
    %v292 = vpow.pop %v291
    %v293 = vmul.f32 %v271, 1.442695
    %v294 = vpow.pop %v293
    %v295 = vmul.f32 %v272, 1.442695
    %v296 = vpow.pop %v295
    %v297 = vmul.f32 %v273, 1.442695
    %v298 = vpow.pop %v297
    %v299 = vmul.f32 %v274, 1.442695
    %v300 = vpow.pop %v299
    %v301 = vmul.f32 %v275, 1.442695
    %v302 = vpow.pop %v301
    %v303 = vmul.f32 %v276, 1.442695
    %v304 = vpow.pop %v303
    %v305 = vmul.f32 %v277, 1.442695
    %v306 = vpow.pop %v305
    %v307 = vmul.f32 %v278, 1.442695
    %v308 = vpow.pop %v307
    %v309 = vmul.f32 %v279, 1.442695
    %v310 = vpow.pop %v309
    %v311 = vmul.f32 %v280, 1.442695
    %v312 = vpow.pop %v311
    %v313 = vadd.f32 %v282, 1.0
    %v314 = vadd.f32 %v284, 1.0
    %v315 = vadd.f32 %v286, 1.0
    %v316 = vadd.f32 %v288, 1.0
    %v317 = vadd.f32 %v290, 1.0
    %v318 = vadd.f32 %v292, 1.0
    %v319 = vadd.f32 %v294, 1.0
    %v320 = vadd.f32 %v296, 1.0
    %v321 = vadd.f32 %v298, 1.0
    %v322 = vadd.f32 %v300, 1.0
    %v323 = vadd.f32 %v302, 1.0
    %v324 = vadd.f32 %v304, 1.0
    %v325 = vadd.f32 %v306, 1.0
    %v326 = vadd.f32 %v308, 1.0
    %v327 = vadd.f32 %v310, 1.0
    %v328 = vadd.f32 %v312, 1.0
    %v329 = vrcp.pop %v313
    %v330 = vmul.f32 1.0, %v329
    %v331 = vrcp.pop %v314
    %v332 = vmul.f32 1.0, %v331
    %v333 = vrcp.pop %v315
    %v334 = vmul.f32 1.0, %v333
    %v335 = vrcp.pop %v316
    %v336 = vmul.f32 1.0, %v335
    %v337 = vrcp.pop %v317
    %v338 = vmul.f32 1.0, %v337
    %v339 = vrcp.pop %v318
    %v340 = vmul.f32 1.0, %v339
    %v341 = vrcp.pop %v319
    %v342 = vmul.f32 1.0, %v341
    %v343 = vrcp.pop %v320
    %v344 = vmul.f32 1.0, %v343
    %v345 = vrcp.pop %v321
    %v346 = vmul.f32 1.0, %v345
    %v347 = vrcp.pop %v322
    %v348 = vmul.f32 1.0, %v347
    %v349 = vrcp.pop %v323
    %v350 = vmul.f32 1.0, %v349
    %v351 = vrcp.pop %v324
    %v352 = vmul.f32 1.0, %v351
    %v353 = vrcp.pop %v325
    %v354 = vmul.f32 1.0, %v353
    %v355 = vrcp.pop %v326
    %v356 = vmul.f32 1.0, %v355
    %v357 = vrcp.pop %v327
    %v358 = vmul.f32 1.0, %v357
    %v359 = vrcp.pop %v328
    %v360 = vmul.f32 1.0, %v359
    %v361 = vmul.f32 %v171, %v330
    %v362 = vmul.f32 %v177, %v332
    %v363 = vmul.f32 %v183, %v334
    %v364 = vmul.f32 %v189, %v336
    %v365 = vmul.f32 %v195, %v338
    %v366 = vmul.f32 %v201, %v340
    %v367 = vmul.f32 %v207, %v342
    %v368 = vmul.f32 %v213, %v344
    %v369 = vmul.f32 %v219, %v346
    %v370 = vmul.f32 %v225, %v348
    %v371 = vmul.f32 %v231, %v350
    %v372 = vmul.f32 %v237, %v352
    %v373 = vmul.f32 %v243, %v354
    %v374 = vmul.f32 %v249, %v356
    %v375 = vmul.f32 %v255, %v358
    %v376 = vmul.f32 %v261, %v360
    %v377 = vmul.f32 %v361, %v173
    %v378 = vmul.f32 %v362, %v179
    %v379 = vmul.f32 %v363, %v185
    %v380 = vmul.f32 %v364, %v191
    %v381 = vmul.f32 %v365, %v197
    %v382 = vmul.f32 %v366, %v203
    %v383 = vmul.f32 %v367, %v209
    %v384 = vmul.f32 %v368, %v215
    %v385 = vmul.f32 %v369, %v221
    %v386 = vmul.f32 %v370, %v227
    %v387 = vmul.f32 %v371, %v233
    %v388 = vmul.f32 %v372, %v239
    %v389 = vmul.f32 %v373, %v245
    %v390 = vmul.f32 %v374, %v251
    %v391 = vmul.f32 %v375, %v257
    %v392 = vmul.f32 %v376, %v263
    %v393 = vld [vmem:[#allocation7] sm:$0xff]
    %v394 = vld [vmem:[#allocation7 + $0x8] sm:$0xff]
    %v395 = vld [vmem:[#allocation7 + $0x10] sm:$0xff]
    %v396 = vld [vmem:[#allocation7 + $0x18] sm:$0xff]
    %v397 = vld [vmem:[#allocation7 + $0x20] sm:$0xff]
    %v398 = vld [vmem:[#allocation7 + $0x28] sm:$0xff]
    %v399 = vld [vmem:[#allocation7 + $0x30] sm:$0xff]
    %v400 = vld [vmem:[#allocation7 + $0x38] sm:$0xff]
    %v401 = vld [vmem:[#allocation7 + $0x40] sm:$0xff]
    %v402 = vld [vmem:[#allocation7 + $0x48] sm:$0xff]
    %v403 = vld [vmem:[#allocation7 + $0x50] sm:$0xff]
    %v404 = vld [vmem:[#allocation7 + $0x58] sm:$0xff]
    %v405 = vld [vmem:[#allocation7 + $0x60] sm:$0xff]
    %v406 = vld [vmem:[#allocation7 + $0x68] sm:$0xff]
    %v407 = vld [vmem:[#allocation7 + $0x70] sm:$0xff]
    %v408 = vld [vmem:[#allocation7 + $0x78] sm:$0xff]
    %409 = vmatprep.subr.mxu0 0.0
    %410 = vmatpush1.msra.mxu0 %v393
    %411 = vmatprep.subr.mxu0 0.0
    %412 = vmatpush1.msra.mxu0 %v394
    %413 = vmatprep.subr.mxu0 0.0
    %414 = vmatpush1.msra.mxu0 %v395
    %415 = vmatprep.subr.mxu0 0.0
    %416 = vmatpush1.msra.mxu0 %v396
    %417 = vmatprep.subr.mxu0 0.0
    %418 = vmatpush1.msra.mxu0 %v397
    %419 = vmatprep.subr.mxu0 0.0
    %420 = vmatpush1.msra.mxu0 %v398
    %421 = vmatprep.subr.mxu0 0.0
    %422 = vmatpush1.msra.mxu0 %v399
    %423 = vmatprep.subr.mxu0 0.0
    %424 = vmatpush1.msra.mxu0 %v400
    %425 = vmatprep.subr.mxu0 0.0
    %426 = vmatpush1.msra.mxu0 %v401
    %427 = vmatprep.subr.mxu0 0.0
    %428 = vmatpush1.msra.mxu0 %v402
    %429 = vmatprep.subr.mxu0 0.0
    %430 = vmatpush1.msra.mxu0 %v403
    %431 = vmatprep.subr.mxu0 0.0
    %432 = vmatpush1.msra.mxu0 %v404
    %433 = vmatprep.subr.mxu0 0.0
    %434 = vmatpush1.msra.mxu0 %v405
    %435 = vmatprep.subr.mxu0 0.0
    %436 = vmatpush1.msra.mxu0 %v406
    %437 = vmatprep.subr.mxu0 0.0
    %438 = vmatpush1.msra.mxu0 %v407
    %439 = vmatprep.subr.mxu0 0.0
    %440 = vmatpush1.msra.mxu0 %v408
    %441 = vmatprep.subr.mxu0 0.0
    %442 = vmatpush1.msra.mxu0 0.0
    %443 = vmatprep.subr.mxu0 0.0
    %444 = vmatpush1.msra.mxu0 0.0
    %445 = vmatprep.subr.mxu0 0.0
    %446 = vmatpush1.msra.mxu0 0.0
    %447 = vmatprep.subr.mxu0 0.0
    %448 = vmatpush1.msra.mxu0 0.0
    %449 = vmatprep.subr.mxu0 0.0
    %450 = vmatpush1.msra.mxu0 0.0
    %451 = vmatprep.subr.mxu0 0.0
    %452 = vmatpush1.msra.mxu0 0.0
    %453 = vmatprep.subr.mxu0 0.0
    %454 = vmatpush1.msra.mxu0 0.0
    %455 = vmatprep.subr.mxu0 0.0
    %456 = vmatpush1.msra.mxu0 0.0
    %457 = vmatprep.subr.mxu0 0.0
    %458 = vmatpush1.msra.mxu0 0.0
    %459 = vmatprep.subr.mxu0 0.0
    %460 = vmatpush1.msra.mxu0 0.0
    %461 = vmatprep.subr.mxu0 0.0
    %462 = vmatpush1.msra.mxu0 0.0
    %463 = vmatprep.subr.mxu0 0.0
    %464 = vmatpush1.msra.mxu0 0.0
    %465 = vmatprep.subr.mxu0 0.0
    %466 = vmatpush1.msra.mxu0 0.0
    %467 = vmatprep.subr.mxu0 0.0
    %468 = vmatpush1.msra.mxu0 0.0
    %469 = vmatprep.subr.mxu0 0.0
    %470 = vmatpush1.msra.mxu0 0.0
    %471 = vmatprep.subr.mxu0 0.0
    %472 = vmatpush1.msra.mxu0 0.0
    %473 = vmatprep.mubr.f32.mxu0 0.0
    %474 = vmatmul.mubr.f32.gmra.mrb[0].mxu0 %v377
    %v475 = vpop.f32.mrb[0].mxu0
    %v476 = vadd.f32 0.0, %v475
    %v477 = vpop.f32.mrb[0].mxu0
    %478 = vmatprep.mubr.f32.mxu0 0.0
    %479 = vmatmul.mubr.f32.gmra.mrb[0].mxu0 %v378
    %v480 = vpop.f32.mrb[0].mxu0
    %v481 = vadd.f32 0.0, %v480
    %v482 = vpop.f32.mrb[0].mxu0
    %483 = vmatprep.mubr.f32.mxu0 0.0
    %484 = vmatmul.mubr.f32.gmra.mrb[0].mxu0 %v379
    %v485 = vpop.f32.mrb[0].mxu0
    %v486 = vadd.f32 0.0, %v485
    %v487 = vpop.f32.mrb[0].mxu0
    %488 = vmatprep.mubr.f32.mxu0 0.0
    %489 = vmatmul.mubr.f32.gmra.mrb[0].mxu0 %v380
    %v490 = vpop.f32.mrb[0].mxu0
    %v491 = vadd.f32 0.0, %v490
    %v492 = vpop.f32.mrb[0].mxu0
    %493 = vmatprep.mubr.f32.mxu0 0.0
    %494 = vmatmul.mubr.f32.gmra.mrb[0].mxu0 %v381
    %v495 = vpop.f32.mrb[0].mxu0
    %v496 = vadd.f32 0.0, %v495
    %v497 = vpop.f32.mrb[0].mxu0
    %498 = vmatprep.mubr.f32.mxu0 0.0
    %499 = vmatmul.mubr.f32.gmra.mrb[0].mxu0 %v382
    %v500 = vpop.f32.mrb[0].mxu0
    %v501 = vadd.f32 0.0, %v500
    %v502 = vpop.f32.mrb[0].mxu0
    %503 = vmatprep.mubr.f32.mxu0 0.0
    %504 = vmatmul.mubr.f32.gmra.mrb[0].mxu0 %v383
    %v505 = vpop.f32.mrb[0].mxu0
    %v506 = vadd.f32 0.0, %v505
    %v507 = vpop.f32.mrb[0].mxu0
    %508 = vmatprep.mubr.f32.mxu0 0.0
    %509 = vmatmul.mubr.f32.gmra.mrb[0].mxu0 %v384
    %v510 = vpop.f32.mrb[0].mxu0
    %v511 = vadd.f32 0.0, %v510
    %v512 = vpop.f32.mrb[0].mxu0
    %513 = vmatprep.mubr.f32.mxu0 0.0
    %514 = vmatmul.mubr.f32.gmra.mrb[0].mxu0 %v385
    %v515 = vpop.f32.mrb[0].mxu0
    %v516 = vadd.f32 0.0, %v515
    %v517 = vpop.f32.mrb[0].mxu0
    %518 = vmatprep.mubr.f32.mxu0 0.0
    %519 = vmatmul.mubr.f32.gmra.mrb[0].mxu0 %v386
    %v520 = vpop.f32.mrb[0].mxu0
    %v521 = vadd.f32 0.0, %v520
    %v522 = vpop.f32.mrb[0].mxu0
    %523 = vmatprep.mubr.f32.mxu0 0.0
    %524 = vmatmul.mubr.f32.gmra.mrb[0].mxu0 %v387
    %v525 = vpop.f32.mrb[0].mxu0
    %v526 = vadd.f32 0.0, %v525
    %v527 = vpop.f32.mrb[0].mxu0
    %528 = vmatprep.mubr.f32.mxu0 0.0
    %529 = vmatmul.mubr.f32.gmra.mrb[0].mxu0 %v388
    %v530 = vpop.f32.mrb[0].mxu0
    %v531 = vadd.f32 0.0, %v530
    %v532 = vpop.f32.mrb[0].mxu0
    %533 = vmatprep.mubr.f32.mxu0 0.0
    %534 = vmatmul.mubr.f32.gmra.mrb[0].mxu0 %v389
    %v535 = vpop.f32.mrb[0].mxu0
    %v536 = vadd.f32 0.0, %v535
    %v537 = vpop.f32.mrb[0].mxu0
    %538 = vmatprep.mubr.f32.mxu0 0.0
    %539 = vmatmul.mubr.f32.gmra.mrb[0].mxu0 %v390
    %v540 = vpop.f32.mrb[0].mxu0
    %v541 = vadd.f32 0.0, %v540
    %v542 = vpop.f32.mrb[0].mxu0
    %543 = vmatprep.mubr.f32.mxu0 0.0
    %544 = vmatmul.mubr.f32.gmra.mrb[0].mxu0 %v391
    %v545 = vpop.f32.mrb[0].mxu0
    %v546 = vadd.f32 0.0, %v545
    %v547 = vpop.f32.mrb[0].mxu0
    %548 = vmatprep.mubr.f32.mxu0 0.0
    %549 = vmatmul.mubr.f32.gmra.mrb[0].mxu0 %v392
    %v550 = vpop.f32.mrb[0].mxu0
    %v551 = vadd.f32 0.0, %v550
    %v552 = vpop.f32.mrb[0].mxu0
    %553 = vdwg.mxu0
    %554 = vst [vmem:[#allocation8] sm:$0xff] %v476
    %555 = vst [vmem:[#allocation8 + $0x8] sm:$0xff] %v481
    %556 = vst [vmem:[#allocation8 + $0x10] sm:$0xff] %v486
    %557 = vst [vmem:[#allocation8 + $0x18] sm:$0xff] %v491
    %558 = vst [vmem:[#allocation8 + $0x20] sm:$0xff] %v496
    %559 = vst [vmem:[#allocation8 + $0x28] sm:$0xff] %v501
    %560 = vst [vmem:[#allocation8 + $0x30] sm:$0xff] %v506
    %561 = vst [vmem:[#allocation8 + $0x38] sm:$0xff] %v511
    %562 = vst [vmem:[#allocation8 + $0x40] sm:$0xff] %v516
    %563 = vst [vmem:[#allocation8 + $0x48] sm:$0xff] %v521
    %564 = vst [vmem:[#allocation8 + $0x50] sm:$0xff] %v526
    %565 = vst [vmem:[#allocation8 + $0x58] sm:$0xff] %v531
    %566 = vst [vmem:[#allocation8 + $0x60] sm:$0xff] %v536
    %567 = vst [vmem:[#allocation8 + $0x68] sm:$0xff] %v541
    %568 = vst [vmem:[#allocation8 + $0x70] sm:$0xff] %v546
    %569 = vst [vmem:[#allocation8 + $0x78] sm:$0xff] %v551
    // Predicated region
    $region26: #{tpu_custom_call.1} parent=1 // pred_check
      _
    $region27: #{tpu_custom_call.1} parent=1 // pred_check_branch
      %571 = sbr.rel (0) target = $region29
    $region28: #{tpu_custom_call.1} parent=1 // pred_region
      %s573 = ssub.s32 2048, 2048
      %574 = vsyncadd [#allocation4], %s573
      %s575 = sshll.u32 [#allocation8], 4
      %s576 = int_to_ptr.vmem [resolvable:$true] %s575
      %581 = dma.vmem_to_hbm [thread:$0]  %s576, 2048, %s3, [#allocation4], 128, 128, 8
    $region29: #{tpu_custom_call.1} parent=1 // pred_fallthru
      _
    // Predicated region
    $region30: #{tpu_custom_call.1} parent=1 // pred_check
      _
    $region31: #{tpu_custom_call.1} parent=1 // pred_check_branch
      %583 = sbr.rel (0) target = $region33
    $region32: #{tpu_custom_call.1} parent=1 // pred_region
      %584 = dma.done [#allocation4], 2048
    $region33: #{tpu_custom_call.1} parent=1 // pred_fallthru
      _
    %585 = vsyncpa [#allocation3], 1
    %586 = vsyncpa [#allocation6], 1
    %587 = vsyncpa [#allocation4], 1

</llo_original>
